<compile_context>
chip_gen: v7x
topology: tpu7x:2x2x1
jax: 0.10.0
libtpu: 0.0.40
codegen_flags: <defaults>
</compile_context>

<pallas_src>
import jax
import jax.numpy as jnp
from jax.experimental import pallas as pl
from jax.experimental.pallas import tpu as pltpu


def _round_up(a, m):
    return (a + m - 1) // m * m


def _cdiv(a, b):
    return -(-a // b)


# ---------------------------------------------------------------------------
# Kernel
# ---------------------------------------------------------------------------
def vae_kernel(x_ref, eps_ref,
               w1_ref, b1_ref, w2_ref, b2_ref,
               wml_ref, bml_ref, wz_ref, bz_ref,
               w3_ref, b3_ref, w4_ref, b4_ref,
               y_ref):
    f32 = jnp.float32
    bf16 = jnp.bfloat16

    def sig(v):                       # sigmoid via tanh: one EUP op / element
        return 0.5 * jnp.tanh(0.5 * v) + 0.5

    def lin(a, w_ref, b_ref):         # bf16 MXU operands, f32 accumulation
        return jnp.dot(a, w_ref[...], preferred_element_type=f32) + b_ref[...]

    x = x_ref[...]                                     # bf16 [TM, 16]

    # encoder
    a1 = sig(lin(x, w1_ref, b1_ref)).astype(bf16)      # [TM, 128]
    a2 = sig(lin(a1, w2_ref, b2_ref)).astype(bf16)     # [TM, 128]

    # _sample_latent: fused mu | log_sigma matmul, lane-aligned split at 128.
    ml = lin(a2, wml_ref, bml_ref)                     # f32 [TM, 256]
    half = wml_ref.shape[1] // 2
    mu = ml[:, :half]
    sigma = jnp.exp(ml[:, half:])
    z = (mu + sigma * eps_ref[...]).astype(bf16)       # reparameterization

    # decoder (z_fc has no activation, matching the PyTorch module)
    a3 = lin(z, wz_ref, bz_ref).astype(bf16)
    a4 = sig(lin(a3, w3_ref, b3_ref)).astype(bf16)
    y = sig(lin(a4, w4_ref, b4_ref))                   # f32 [TM, 16]

    y_ref[...] = y.astype(y_ref.dtype)


# ---------------------------------------------------------------------------
# Parameter packing (done ONCE).  Only dims that feed 128-lane activations are
# padded; w1 keeps K=16, w4/b4 keep N=16.  mu|log_sigma are fused.
# ---------------------------------------------------------------------------
def prepare_params(params):
    (w1, b1, w2, b2, wmu, bmu, wls, bls, wz, bz, w3, b3, w4, b4) = params
    bf16 = jnp.bfloat16

    d0, d1 = w1.shape          # 16, 32
    d2 = w2.shape[1]           # 100
    L = wmu.shape[1]           # 50
    d1p, d2p, Lp = _round_up(d1, 128), _round_up(d2, 128), _round_up(L, 128)

    def pw(w, rows_to, cols_to):
        r, c = w.shape
        return jnp.pad(w, ((0, rows_to - r), (0, cols_to - c)))

    def pb(b, cols_to):
        b = jnp.asarray(b, jnp.float32).reshape(1, -1)
        return jnp.pad(b, ((0, 0), (0, cols_to - b.shape[1])))

    wml = jnp.concatenate([pw(wmu, d2p, Lp), pw(wls, d2p, Lp)], axis=1).astype(bf16)
    bml = jnp.concatenate([pb(bmu, Lp), pb(bls, Lp)], axis=1)

    return [
        pw(w1, d0, d1p).astype(bf16),  pb(b1, d1p),    # [16, 128], [1, 128]
        pw(w2, d1p, d2p).astype(bf16), pb(b2, d2p),    # [128, 128]
        wml, bml,                                      # [128, 256], [1, 256]
        pw(wz, Lp, d2p).astype(bf16),  pb(bz, d2p),    # [128, 128]
        pw(w3, d2p, d1p).astype(bf16), pb(b3, d1p),    # [128, 128]
        pw(w4, d1p, d0).astype(bf16),  pb(b4, d0),     # [128, 16], [1, 16]
    ]


# ---------------------------------------------------------------------------
# Wrapper
# ---------------------------------------------------------------------------
def vae_forward(x, eps, packed_params, *, tm_max=2048):
    """x: [B, dims[0]] f32, eps: [B, latent_dim] f32 (std_z)."""
    B, d0 = x.shape
    L = eps.shape[1]
    Lp = _round_up(L, 128)

    rows = _round_up(B, 16)
    # >= 2 grid steps once the batch allows it (v7x megacore), tiles <= tm_max.
    n_steps = max(_cdiv(rows, tm_max), min(rows // 16, 2))
    TM = _round_up(_cdiv(rows, n_steps), 16)
    Bp = _round_up(rows, TM)

    xp = jnp.pad(x, ((0, Bp - B), (0, 0))).astype(jnp.bfloat16)          # [Bp, 16]
    ep = jnp.pad(eps, ((0, Bp - B), (0, Lp - L))).astype(jnp.bfloat16)   # [Bp, 128]

    batch_map = lambda i: (i, 0)     # tiled over batch
    const_map = lambda i: (0, 0)     # resident weights/biases

    in_specs = [
        pl.BlockSpec((TM, d0), batch_map),
        pl.BlockSpec((TM, Lp), batch_map),
    ] + [pl.BlockSpec(p.shape, const_map) for p in packed_params]

    out = pl.pallas_call(
        vae_kernel,
        out_shape=jax.ShapeDtypeStruct((Bp, d0), jnp.float32),
        grid=(Bp // TM,),
        in_specs=in_specs,
        out_specs=pl.BlockSpec((TM, d0), batch_map),
        compiler_params=pltpu.CompilerParams(
            dimension_semantics=("parallel",),
            vmem_limit_bytes=64 << 20),
    )(xp, ep, *packed_params)

    return out[:B]


# ---------------------------------------------------------------------------
# Init + reference
# ---------------------------------------------------------------------------
def init_params(key, dims, latent_dim):
    """torch.nn.Linear-style uniform init, stored as (W[in,out], b[1,out])."""
    layer_shapes = [
        (dims[0], dims[1]),     # fc1
        (dims[1], dims[2]),     # fc2
        (100, latent_dim),      # _enc_mu
        (dims[2], latent_dim),  # _enc_log_sigma
        (50, dims[2]),          # z_fc
        (dims[2], dims[1]),     # fc3
        (dims[1], dims[0]),     # fc4
    ]
    params = []
    for (fan_in, fan_out) in layer_shapes:
        key, kw, kb = jax.random.split(key, 3)
        bound = 1.0 / jnp.sqrt(fan_in)
        w = jax.random.uniform(kw, (fan_in, fan_out), jnp.float32, -bound, bound)
        b = jax.random.uniform(kb, (1, fan_out), jnp.float32, -bound, bound)
        params += [w, b]
    return params


def vae_reference(x, eps, params):
    """Plain-JAX reference mirroring the PyTorch forward, with the same
    bf16-operand / f32-accumulate matmul precision (and bf16 eps) as the kernel."""
    (w1, b1, w2, b2, wmu, bmu, wls, bls, wz, bz, w3, b3, w4, b4) = params
    bf16, f32 = jnp.bfloat16, jnp.float32
    sig = jax.nn.sigmoid

    def lin(a, w, b):
        return jnp.dot(a.astype(bf16), w.astype(bf16),
                       preferred_element_type=f32) + b

    a1 = sig(lin(x, w1, b1))
    a2 = sig(lin(a1, w2, b2))
    mu = lin(a2, wmu, bmu)
    sigma = jnp.exp(lin(a2, wls, bls))
    eps_q = eps.astype(bf16).astype(f32)   # kernel receives eps in bf16
    z = mu + sigma * eps_q
    a3 = lin(z, wz, bz)
    a4 = sig(lin(a3, w3, b3))
    return sig(lin(a4, w4, b4))


if __name__ == "__main__":
    # dims[2] must be 100 and latent_dim must be 50 for the PyTorch module to run.
    dims = (16, 32, 100)
    latent_dim = 50
    B = 2

    key = jax.random.PRNGKey(0)
    key, kx, keps, kp = jax.random.split(key, 4)

    x = jax.random.normal(kx, (B, dims[0]), jnp.float32)
    eps = jax.random.normal(keps, (B, latent_dim), jnp.float32)   # std_z
    params = init_params(kp, dims, latent_dim)
    packed = prepare_params(params)

    y = vae_forward(x, eps, packed)
    y = jax.block_until_ready(y)

    y_ref = vae_reference(x, eps, params)
    assert y.shape == (B, dims[0])
    assert jnp.allclose(y, y_ref, atol=2e-3, rtol=1e-3), (
        float(jnp.max(jnp.abs(y - y_ref))))

    print("KERNEL_OK")
</pallas_src>

<mosaic_0001>
module attributes {stable_mosaic.version = 11 : i64} {
  func.func @vae_kernel(%arg0: i32, %arg1: memref<16x16xbf16, #tpu.memory_space<vmem>>, %arg2: memref<16x128xbf16, #tpu.memory_space<vmem>>, %arg3: memref<16x128xbf16, #tpu.memory_space<vmem>>, %arg4: memref<1x128xf32, #tpu.memory_space<vmem>>, %arg5: memref<128x128xbf16, #tpu.memory_space<vmem>>, %arg6: memref<1x128xf32, #tpu.memory_space<vmem>>, %arg7: memref<128x256xbf16, #tpu.memory_space<vmem>>, %arg8: memref<1x256xf32, #tpu.memory_space<vmem>>, %arg9: memref<128x128xbf16, #tpu.memory_space<vmem>>, %arg10: memref<1x128xf32, #tpu.memory_space<vmem>>, %arg11: memref<128x128xbf16, #tpu.memory_space<vmem>>, %arg12: memref<1x128xf32, #tpu.memory_space<vmem>>, %arg13: memref<128x16xbf16, #tpu.memory_space<vmem>>, %arg14: memref<1x16xf32, #tpu.memory_space<vmem>>, %arg15: memref<16x16xf32, #tpu.memory_space<vmem>>) attributes {dimension_semantics = [#tpu.dimension_semantics<parallel>], iteration_bounds = array<i64: 1>, scalar_prefetch = 0 : i64, scratch_operands = 0 : i64, tpu.core_type = #tpu.core_type<tc>, window_params = [{transform_indices = @transform_0, window_bounds = array<i64: 16, 16>}, {transform_indices = @transform_1, window_bounds = array<i64: 16, 128>}, {pipeline_mode = #tpu.pipeline_mode<synchronous>, transform_indices = @transform_2, window_bounds = array<i64: 16, 128>}, {pipeline_mode = #tpu.pipeline_mode<synchronous>, transform_indices = @transform_3, window_bounds = array<i64: 1, 128>}, {pipeline_mode = #tpu.pipeline_mode<synchronous>, transform_indices = @transform_4, window_bounds = array<i64: 128, 128>}, {pipeline_mode = #tpu.pipeline_mode<synchronous>, transform_indices = @transform_5, window_bounds = array<i64: 1, 128>}, {pipeline_mode = #tpu.pipeline_mode<synchronous>, transform_indices = @transform_6, window_bounds = array<i64: 128, 256>}, {pipeline_mode = #tpu.pipeline_mode<synchronous>, transform_indices = @transform_7, window_bounds = array<i64: 1, 256>}, {pipeline_mode = #tpu.pipeline_mode<synchronous>, transform_indices = @transform_8, window_bounds = array<i64: 128, 128>}, {pipeline_mode = #tpu.pipeline_mode<synchronous>, transform_indices = @transform_9, window_bounds = array<i64: 1, 128>}, {pipeline_mode = #tpu.pipeline_mode<synchronous>, transform_indices = @transform_10, window_bounds = array<i64: 128, 128>}, {pipeline_mode = #tpu.pipeline_mode<synchronous>, transform_indices = @transform_11, window_bounds = array<i64: 1, 128>}, {pipeline_mode = #tpu.pipeline_mode<synchronous>, transform_indices = @transform_12, window_bounds = array<i64: 128, 16>}, {pipeline_mode = #tpu.pipeline_mode<synchronous>, transform_indices = @transform_13, window_bounds = array<i64: 1, 16>}, {transform_indices = @transform_14, window_bounds = array<i64: 16, 16>}]} {
    %c0 = arith.constant 0 : index
    %c0_0 = arith.constant 0 : index
    %0 = vector.load %arg1[%c0, %c0_0] : memref<16x16xbf16, #tpu.memory_space<vmem>>, vector<16x16xbf16>
    %c0_1 = arith.constant 0 : index
    %c0_2 = arith.constant 0 : index
    %1 = vector.load %arg3[%c0_1, %c0_2] : memref<16x128xbf16, #tpu.memory_space<vmem>>, vector<16x128xbf16>
    %cst = arith.constant dense<0.000000e+00> : vector<16x128xf32>
    %2 = tpu.matmul %0, %1, %cst {dimension_numbers = #tpu.dot_dimension_numbers<[1], [0], [0], [1], [0, 0, 1, 1], [], []>} : vector<16x16xbf16>, vector<16x128xbf16>, vector<16x128xf32> -> vector<16x128xf32>
    %c0_3 = arith.constant 0 : index
    %c0_4 = arith.constant 0 : index
    %3 = vector.load %arg4[%c0_3, %c0_4] : memref<1x128xf32, #tpu.memory_space<vmem>>, vector<1x128xf32>
    %4 = vector.broadcast %3 : vector<1x128xf32> to vector<16x128xf32>
    %5 = arith.addf %2, %4 : vector<16x128xf32>
    %cst_5 = arith.constant 5.000000e-01 : f32
    %6 = vector.broadcast %cst_5 : f32 to vector<16x128xf32>
    %7 = arith.mulf %6, %5 : vector<16x128xf32>
    %8 = math.tanh %7 : vector<16x128xf32>
    %cst_6 = arith.constant 5.000000e-01 : f32
    %9 = vector.broadcast %cst_6 : f32 to vector<16x128xf32>
    %10 = arith.mulf %9, %8 : vector<16x128xf32>
    %cst_7 = arith.constant 5.000000e-01 : f32
    %11 = vector.broadcast %cst_7 : f32 to vector<16x128xf32>
    %12 = arith.addf %10, %11 : vector<16x128xf32>
    %13 = arith.truncf %12 : vector<16x128xf32> to vector<16x128xbf16>
    %c0_8 = arith.constant 0 : index
    %c0_9 = arith.constant 0 : index
    %14 = vector.load %arg5[%c0_8, %c0_9] : memref<128x128xbf16, #tpu.memory_space<vmem>>, vector<128x128xbf16>
    %cst_10 = arith.constant dense<0.000000e+00> : vector<16x128xf32>
    %15 = tpu.matmul %13, %14, %cst_10 {dimension_numbers = #tpu.dot_dimension_numbers<[1], [0], [0], [1], [0, 0, 1, 1], [], []>} : vector<16x128xbf16>, vector<128x128xbf16>, vector<16x128xf32> -> vector<16x128xf32>
    %c0_11 = arith.constant 0 : index
    %c0_12 = arith.constant 0 : index
    %16 = vector.load %arg6[%c0_11, %c0_12] : memref<1x128xf32, #tpu.memory_space<vmem>>, vector<1x128xf32>
    %17 = vector.broadcast %16 : vector<1x128xf32> to vector<16x128xf32>
    %18 = arith.addf %15, %17 : vector<16x128xf32>
    %cst_13 = arith.constant 5.000000e-01 : f32
    %19 = vector.broadcast %cst_13 : f32 to vector<16x128xf32>
    %20 = arith.mulf %19, %18 : vector<16x128xf32>
    %21 = math.tanh %20 : vector<16x128xf32>
    %cst_14 = arith.constant 5.000000e-01 : f32
    %22 = vector.broadcast %cst_14 : f32 to vector<16x128xf32>
    %23 = arith.mulf %22, %21 : vector<16x128xf32>
    %cst_15 = arith.constant 5.000000e-01 : f32
    %24 = vector.broadcast %cst_15 : f32 to vector<16x128xf32>
    %25 = arith.addf %23, %24 : vector<16x128xf32>
    %26 = arith.truncf %25 : vector<16x128xf32> to vector<16x128xbf16>
    %c0_16 = arith.constant 0 : index
    %c0_17 = arith.constant 0 : index
    %27 = vector.load %arg7[%c0_16, %c0_17] : memref<128x256xbf16, #tpu.memory_space<vmem>>, vector<128x256xbf16>
    %cst_18 = arith.constant dense<0.000000e+00> : vector<16x256xf32>
    %28 = tpu.matmul %26, %27, %cst_18 {dimension_numbers = #tpu.dot_dimension_numbers<[1], [0], [0], [1], [0, 0, 1, 1], [], []>} : vector<16x128xbf16>, vector<128x256xbf16>, vector<16x256xf32> -> vector<16x256xf32>
    %c0_19 = arith.constant 0 : index
    %c0_20 = arith.constant 0 : index
    %29 = vector.load %arg8[%c0_19, %c0_20] : memref<1x256xf32, #tpu.memory_space<vmem>>, vector<1x256xf32>
    %30 = vector.broadcast %29 : vector<1x256xf32> to vector<16x256xf32>
    %31 = arith.addf %28, %30 : vector<16x256xf32>
    %32 = vector.extract_strided_slice %31 {offsets = [0, 0], sizes = [16, 128], strides = [1, 1]} : vector<16x256xf32> to vector<16x128xf32>
    %33 = vector.extract_strided_slice %31 {offsets = [0, 128], sizes = [16, 128], strides = [1, 1]} : vector<16x256xf32> to vector<16x128xf32>
    %34 = math.exp %33 : vector<16x128xf32>
    %c0_21 = arith.constant 0 : index
    %c0_22 = arith.constant 0 : index
    %35 = vector.load %arg2[%c0_21, %c0_22] : memref<16x128xbf16, #tpu.memory_space<vmem>>, vector<16x128xbf16>
    %36 = arith.extf %35 : vector<16x128xbf16> to vector<16x128xf32>
    %37 = arith.mulf %34, %36 : vector<16x128xf32>
    %38 = arith.addf %32, %37 : vector<16x128xf32>
    %39 = arith.truncf %38 : vector<16x128xf32> to vector<16x128xbf16>
    %c0_23 = arith.constant 0 : index
    %c0_24 = arith.constant 0 : index
    %40 = vector.load %arg9[%c0_23, %c0_24] : memref<128x128xbf16, #tpu.memory_space<vmem>>, vector<128x128xbf16>
    %cst_25 = arith.constant dense<0.000000e+00> : vector<16x128xf32>
    %41 = tpu.matmul %39, %40, %cst_25 {dimension_numbers = #tpu.dot_dimension_numbers<[1], [0], [0], [1], [0, 0, 1, 1], [], []>} : vector<16x128xbf16>, vector<128x128xbf16>, vector<16x128xf32> -> vector<16x128xf32>
    %c0_26 = arith.constant 0 : index
    %c0_27 = arith.constant 0 : index
    %42 = vector.load %arg10[%c0_26, %c0_27] : memref<1x128xf32, #tpu.memory_space<vmem>>, vector<1x128xf32>
    %43 = vector.broadcast %42 : vector<1x128xf32> to vector<16x128xf32>
    %44 = arith.addf %41, %43 : vector<16x128xf32>
    %45 = arith.truncf %44 : vector<16x128xf32> to vector<16x128xbf16>
    %c0_28 = arith.constant 0 : index
    %c0_29 = arith.constant 0 : index
    %46 = vector.load %arg11[%c0_28, %c0_29] : memref<128x128xbf16, #tpu.memory_space<vmem>>, vector<128x128xbf16>
    %cst_30 = arith.constant dense<0.000000e+00> : vector<16x128xf32>
    %47 = tpu.matmul %45, %46, %cst_30 {dimension_numbers = #tpu.dot_dimension_numbers<[1], [0], [0], [1], [0, 0, 1, 1], [], []>} : vector<16x128xbf16>, vector<128x128xbf16>, vector<16x128xf32> -> vector<16x128xf32>
    %c0_31 = arith.constant 0 : index
    %c0_32 = arith.constant 0 : index
    %48 = vector.load %arg12[%c0_31, %c0_32] : memref<1x128xf32, #tpu.memory_space<vmem>>, vector<1x128xf32>
    %49 = vector.broadcast %48 : vector<1x128xf32> to vector<16x128xf32>
    %50 = arith.addf %47, %49 : vector<16x128xf32>
    %cst_33 = arith.constant 5.000000e-01 : f32
    %51 = vector.broadcast %cst_33 : f32 to vector<16x128xf32>
    %52 = arith.mulf %51, %50 : vector<16x128xf32>
    %53 = math.tanh %52 : vector<16x128xf32>
    %cst_34 = arith.constant 5.000000e-01 : f32
    %54 = vector.broadcast %cst_34 : f32 to vector<16x128xf32>
    %55 = arith.mulf %54, %53 : vector<16x128xf32>
    %cst_35 = arith.constant 5.000000e-01 : f32
    %56 = vector.broadcast %cst_35 : f32 to vector<16x128xf32>
    %57 = arith.addf %55, %56 : vector<16x128xf32>
    %58 = arith.truncf %57 : vector<16x128xf32> to vector<16x128xbf16>
    %c0_36 = arith.constant 0 : index
    %c0_37 = arith.constant 0 : index
    %59 = vector.load %arg13[%c0_36, %c0_37] : memref<128x16xbf16, #tpu.memory_space<vmem>>, vector<128x16xbf16>
    %cst_38 = arith.constant dense<0.000000e+00> : vector<16x16xf32>
    %60 = tpu.matmul %58, %59, %cst_38 {dimension_numbers = #tpu.dot_dimension_numbers<[1], [0], [0], [1], [0, 0, 1, 1], [], []>} : vector<16x128xbf16>, vector<128x16xbf16>, vector<16x16xf32> -> vector<16x16xf32>
    %c0_39 = arith.constant 0 : index
    %c0_40 = arith.constant 0 : index
    %61 = vector.load %arg14[%c0_39, %c0_40] : memref<1x16xf32, #tpu.memory_space<vmem>>, vector<1x16xf32>
    %62 = vector.broadcast %61 : vector<1x16xf32> to vector<16x16xf32>
    %63 = arith.addf %60, %62 : vector<16x16xf32>
    %cst_41 = arith.constant 5.000000e-01 : f32
    %64 = vector.broadcast %cst_41 : f32 to vector<16x16xf32>
    %65 = arith.mulf %64, %63 : vector<16x16xf32>
    %66 = math.tanh %65 : vector<16x16xf32>
    %cst_42 = arith.constant 5.000000e-01 : f32
    %67 = vector.broadcast %cst_42 : f32 to vector<16x16xf32>
    %68 = arith.mulf %67, %66 : vector<16x16xf32>
    %cst_43 = arith.constant 5.000000e-01 : f32
    %69 = vector.broadcast %cst_43 : f32 to vector<16x16xf32>
    %70 = arith.addf %68, %69 : vector<16x16xf32>
    %c0_44 = arith.constant 0 : index
    %c0_45 = arith.constant 0 : index
    %71 = vector.load %arg15[%c0_44, %c0_45] : memref<16x16xf32, #tpu.memory_space<vmem>>, vector<16x16xf32>
    tpu.vector_store %arg15[%c0_44, %c0_45], %70 {strides = array<i32>} : memref<16x16xf32, #tpu.memory_space<vmem>>, vector<16x16xf32>,
    return
  }
  func.func @transform_0(%arg0: i32) -> (i32, i32) {
    %c0_i32 = arith.constant 0 : i32
    %c0_i32_0 = arith.constant 0 : i32
    return %arg0, %c0_i32 : i32, i32
  }
  func.func @transform_1(%arg0: i32) -> (i32, i32) {
    %c0_i32 = arith.constant 0 : i32
    %c0_i32_0 = arith.constant 0 : i32
    return %arg0, %c0_i32 : i32, i32
  }
  func.func @transform_2(%arg0: i32) -> (i32, i32) {
    %c0_i32 = arith.constant 0 : i32
    %c0_i32_0 = arith.constant 0 : i32
    %c0_i32_1 = arith.constant 0 : i32
    return %c0_i32, %c0_i32_0 : i32, i32
  }
  func.func @transform_3(%arg0: i32) -> (i32, i32) {
    %c0_i32 = arith.constant 0 : i32
    %c0_i32_0 = arith.constant 0 : i32
    %c0_i32_1 = arith.constant 0 : i32
    return %c0_i32, %c0_i32_0 : i32, i32
  }
  func.func @transform_4(%arg0: i32) -> (i32, i32) {
    %c0_i32 = arith.constant 0 : i32
    %c0_i32_0 = arith.constant 0 : i32
    %c0_i32_1 = arith.constant 0 : i32
    return %c0_i32, %c0_i32_0 : i32, i32
  }
  func.func @transform_5(%arg0: i32) -> (i32, i32) {
    %c0_i32 = arith.constant 0 : i32
    %c0_i32_0 = arith.constant 0 : i32
    %c0_i32_1 = arith.constant 0 : i32
    return %c0_i32, %c0_i32_0 : i32, i32
  }
  func.func @transform_6(%arg0: i32) -> (i32, i32) {
    %c0_i32 = arith.constant 0 : i32
    %c0_i32_0 = arith.constant 0 : i32
    %c0_i32_1 = arith.constant 0 : i32
    return %c0_i32, %c0_i32_0 : i32, i32
  }
  func.func @transform_7(%arg0: i32) -> (i32, i32) {
    %c0_i32 = arith.constant 0 : i32
    %c0_i32_0 = arith.constant 0 : i32
    %c0_i32_1 = arith.constant 0 : i32
    return %c0_i32, %c0_i32_0 : i32, i32
  }
  func.func @transform_8(%arg0: i32) -> (i32, i32) {
    %c0_i32 = arith.constant 0 : i32
    %c0_i32_0 = arith.constant 0 : i32
    %c0_i32_1 = arith.constant 0 : i32
    return %c0_i32, %c0_i32_0 : i32, i32
  }
  func.func @transform_9(%arg0: i32) -> (i32, i32) {
    %c0_i32 = arith.constant 0 : i32
    %c0_i32_0 = arith.constant 0 : i32
    %c0_i32_1 = arith.constant 0 : i32
    return %c0_i32, %c0_i32_0 : i32, i32
  }
  func.func @transform_10(%arg0: i32) -> (i32, i32) {
    %c0_i32 = arith.constant 0 : i32
    %c0_i32_0 = arith.constant 0 : i32
    %c0_i32_1 = arith.constant 0 : i32
    return %c0_i32, %c0_i32_0 : i32, i32
  }
  func.func @transform_11(%arg0: i32) -> (i32, i32) {
    %c0_i32 = arith.constant 0 : i32
    %c0_i32_0 = arith.constant 0 : i32
    %c0_i32_1 = arith.constant 0 : i32
    return %c0_i32, %c0_i32_0 : i32, i32
  }
  func.func @transform_12(%arg0: i32) -> (i32, i32) {
    %c0_i32 = arith.constant 0 : i32
    %c0_i32_0 = arith.constant 0 : i32
    %c0_i32_1 = arith.constant 0 : i32
    return %c0_i32, %c0_i32_0 : i32, i32
  }
  func.func @transform_13(%arg0: i32) -> (i32, i32) {
    %c0_i32 = arith.constant 0 : i32
    %c0_i32_0 = arith.constant 0 : i32
    %c0_i32_1 = arith.constant 0 : i32
    return %c0_i32, %c0_i32_0 : i32, i32
  }
  func.func @transform_14(%arg0: i32) -> (i32, i32) {
    %c0_i32 = arith.constant 0 : i32
    %c0_i32_0 = arith.constant 0 : i32
    return %arg0, %c0_i32 : i32, i32
  }
}

</mosaic_0001>

<llo_original>
// kernel: tpu_custom_call.1
$region0: #{tpu_custom_call.1}
  #allocation0 [shape = 'u32[]', space=smem, size = 0x4, offset = 0x4, fixed_abs, tag = 'smem constant byte address 0x4 - core index']
  #allocation1 [shape = 'u32[144,128]{1,0:T(1,128)}', space=vmem, size = 0x12000, scoped, tag = 'internal scratch']
  %s0 = inlined_call_operand.hbm [shape: bf16[16,16], index: 0, kind: input, shape index: {}]
  %s1 = inlined_call_operand.hbm [shape: bf16[16,128], index: 1, kind: input, shape index: {}]
  %s2 = inlined_call_operand.hbm [shape: bf16[16,128], index: 2, kind: input, shape index: {}]
  %s3 = inlined_call_operand.hbm [shape: f32[1,128], index: 3, kind: input, shape index: {}]
  %s4 = inlined_call_operand.hbm [shape: bf16[128,128], index: 4, kind: input, shape index: {}]
  %s5 = inlined_call_operand.hbm [shape: f32[1,128], index: 5, kind: input, shape index: {}]
  %s6 = inlined_call_operand.hbm [shape: bf16[128,256], index: 6, kind: input, shape index: {}]
  %s7 = inlined_call_operand.hbm [shape: f32[1,256], index: 7, kind: input, shape index: {}]
  %s8 = inlined_call_operand.hbm [shape: bf16[128,128], index: 8, kind: input, shape index: {}]
  %s9 = inlined_call_operand.hbm [shape: f32[1,128], index: 9, kind: input, shape index: {}]
  %s10 = inlined_call_operand.hbm [shape: bf16[128,128], index: 10, kind: input, shape index: {}]
  %s11 = inlined_call_operand.hbm [shape: f32[1,128], index: 11, kind: input, shape index: {}]
  %s12 = inlined_call_operand.hbm [shape: bf16[128,16], index: 12, kind: input, shape index: {}]
  %s13 = inlined_call_operand.hbm [shape: f32[1,16], index: 13, kind: input, shape index: {}]
  %s14 = inlined_call_operand.hbm [shape: f32[16,16], index: 14, kind: output, shape index: {}]
  %s15 = sld [smem:[#allocation0]]
  $region122: #{tpu_custom_call.1} parent=0
    _
  %s17 = ssub.s32 1, %s15
  %s18 = scalar_select 0, %s17, %s15
  $region1: #{tpu_custom_call.1} parent=0
    #allocation2 [shape = 'u8[4096]{0}', space=vmem, size = 0x1000, scoped, tag = 'input window, operand 0, single buffered']
    #allocation3 [shape = 's32[1]{0}', space=sflag, size = 0x4, scoped, tag = 'scoped memory for tpu_custom_call.1']
    #allocation4 [shape = 's32[1]{0}', space=sflag, size = 0x4, scoped, tag = 'scoped memory for tpu_custom_call.1']
    #allocation5 [shape = 'u8[4096]{0}', space=vmem, size = 0x1000, scoped, tag = 'input window, operand 1, single buffered']
    #allocation6 [shape = 's32[1]{0}', space=sflag, size = 0x4, scoped, tag = 'scoped memory for tpu_custom_call.1']
    #allocation7 [shape = 'u8[4096]{0}', space=vmem, size = 0x1000, scoped, tag = 'input window, operand 2, single buffered']
    #allocation8 [shape = 'u8[512]{0}', space=vmem, size = 0x400, scoped, tag = 'input window, operand 3, single buffered']
    #allocation9 [shape = 's32[1]{0}', space=sflag, size = 0x4, scoped, tag = 'scoped memory for tpu_custom_call.1']
    #allocation10 [shape = 'u8[32768]{0}', space=vmem, size = 0x8000, scoped, tag = 'input window, operand 4, single buffered']
    #allocation11 [shape = 'u8[512]{0}', space=vmem, size = 0x400, scoped, tag = 'input window, operand 5, single buffered']
    #allocation12 [shape = 's32[1]{0}', space=sflag, size = 0x4, scoped, tag = 'scoped memory for tpu_custom_call.1']
    #allocation13 [shape = 'u8[65536]{0}', space=vmem, size = 0x10000, scoped, tag = 'input window, operand 6, single buffered']
    #allocation14 [shape = 'u8[1024]{0}', space=vmem, size = 0x400, scoped, tag = 'input window, operand 7, single buffered']
    #allocation15 [shape = 's32[1]{0}', space=sflag, size = 0x4, scoped, tag = 'scoped memory for tpu_custom_call.1']
    #allocation16 [shape = 'u8[32768]{0}', space=vmem, size = 0x8000, scoped, tag = 'input window, operand 8, single buffered']
    #allocation17 [shape = 'u8[512]{0}', space=vmem, size = 0x400, scoped, tag = 'input window, operand 9, single buffered']
    #allocation18 [shape = 's32[1]{0}', space=sflag, size = 0x4, scoped, tag = 'scoped memory for tpu_custom_call.1']
    #allocation19 [shape = 'u8[32768]{0}', space=vmem, size = 0x8000, scoped, tag = 'input window, operand 10, single buffered']
    #allocation20 [shape = 'u8[512]{0}', space=vmem, size = 0x400, scoped, tag = 'input window, operand 11, single buffered']
    #allocation21 [shape = 's32[1]{0}', space=sflag, size = 0x4, scoped, tag = 'scoped memory for tpu_custom_call.1']
    #allocation22 [shape = 'u8[32768]{0}', space=vmem, size = 0x8000, scoped, tag = 'input window, operand 12, single buffered']
    #allocation23 [shape = 'u8[512]{0}', space=vmem, size = 0x400, scoped, tag = 'input window, operand 13, single buffered']
    #allocation24 [shape = 's32[1]{0}', space=sflag, size = 0x4, scoped, tag = 'scoped memory for tpu_custom_call.1']
    #allocation25 [shape = 'u8[8192]{0}', space=vmem, size = 0x2000, scoped, tag = 'output window, operand 0, single buffered']
    %19 = vsyncpa [#allocation3], 0
    %20 = vsyncpa [#allocation6], 0
    %21 = vsyncpa [#allocation9], 0
    %22 = vsyncpa [#allocation12], 0
    %23 = vsyncpa [#allocation15], 0
    %24 = vsyncpa [#allocation18], 0
    %25 = vsyncpa [#allocation21], 0
    %26 = vsyncpa [#allocation24], 0
    %27 = vsyncpa [#allocation4], 0
    // Predicated region
    $region2: #{tpu_custom_call.1} parent=1 // pred_check
      _
    $region3: #{tpu_custom_call.1} parent=1 // pred_check_branch
      %29 = sbr.rel (0) target = $region5
    $region4: #{tpu_custom_call.1} parent=1 // pred_region
      %s31 = ssub.s32 128, 128
      %32 = vsyncadd [#allocation3], %s31
      %s33 = sshll.u32 [#allocation2], 4
      %s34 = int_to_ptr.vmem [resolvable:$true] %s33
      %39 = dma.hbm_to_vmem [thread:$0]  %s0, 128, %s34, [#allocation3], 64, 64, 4
    $region5: #{tpu_custom_call.1} parent=1 // pred_fallthru
      _
    // Predicated region
    $region6: #{tpu_custom_call.1} parent=1 // pred_check
      _
    $region7: #{tpu_custom_call.1} parent=1 // pred_check_branch
      %41 = sbr.rel (0) target = $region9
    $region8: #{tpu_custom_call.1} parent=1 // pred_region
      %s43 = ssub.s32 128, 128
      %44 = vsyncadd [#allocation6], %s43
      %s45 = sshll.u32 [#allocation5], 4
      %s46 = int_to_ptr.vmem [resolvable:$true] %s45
      %51 = dma.hbm_to_vmem [thread:$0]  %s1, 128, %s46, [#allocation6], 64, 64, 4
    $region9: #{tpu_custom_call.1} parent=1 // pred_fallthru
      _
    // Predicated region
    $region10: #{tpu_custom_call.1} parent=1 // pred_check
      _
    $region11: #{tpu_custom_call.1} parent=1 // pred_check_branch
      %53 = sbr.rel (0) target = $region13
    $region12: #{tpu_custom_call.1} parent=1 // pred_region
      %s55 = ssub.s32 128, 128
      %56 = vsyncadd [#allocation6], %s55
      %s57 = sshll.u32 [#allocation7], 4
      %s58 = int_to_ptr.vmem [resolvable:$true] %s57
      %63 = dma.hbm_to_vmem [thread:$0]  %s2, 128, %s58, [#allocation6], 64, 64, 4
    $region13: #{tpu_custom_call.1} parent=1 // pred_fallthru
      _
    // Predicated region
    $region14: #{tpu_custom_call.1} parent=1 // pred_check
      _
    $region15: #{tpu_custom_call.1} parent=1 // pred_check_branch
      %65 = sbr.rel (0) target = $region17
    $region16: #{tpu_custom_call.1} parent=1 // pred_region
      %s67 = ssub.s32 16, 16
      %68 = vsyncadd [#allocation9], %s67
      %s70 = sshll.u32 [#allocation8], 4
      %s71 = int_to_ptr.vmem [resolvable:$true] %s70
      %73 = dma.hbm_to_vmem [thread:$0]  %s3, 16, %s71, [#allocation9]
    $region17: #{tpu_custom_call.1} parent=1 // pred_fallthru
      _
    // Predicated region
    $region18: #{tpu_custom_call.1} parent=1 // pred_check
      _
    $region19: #{tpu_custom_call.1} parent=1 // pred_check_branch
      %75 = sbr.rel (0) target = $region21
    $region20: #{tpu_custom_call.1} parent=1 // pred_region
      %s77 = ssub.s32 1024, 1024
      %78 = vsyncadd [#allocation9], %s77
      %s79 = sshll.u32 [#allocation10], 4
      %s80 = int_to_ptr.vmem [resolvable:$true] %s79
      %85 = dma.hbm_to_vmem [thread:$0]  %s4, 1024, %s80, [#allocation9], 64, 64, 4
    $region21: #{tpu_custom_call.1} parent=1 // pred_fallthru
      _
    // Predicated region
    $region22: #{tpu_custom_call.1} parent=1 // pred_check
      _
    $region23: #{tpu_custom_call.1} parent=1 // pred_check_branch
      %87 = sbr.rel (0) target = $region25
    $region24: #{tpu_custom_call.1} parent=1 // pred_region
      %s89 = ssub.s32 16, 16
      %90 = vsyncadd [#allocation12], %s89
      %s92 = sshll.u32 [#allocation11], 4
      %s93 = int_to_ptr.vmem [resolvable:$true] %s92
      %95 = dma.hbm_to_vmem [thread:$0]  %s5, 16, %s93, [#allocation12]
    $region25: #{tpu_custom_call.1} parent=1 // pred_fallthru
      _
    // Predicated region
    $region26: #{tpu_custom_call.1} parent=1 // pred_check
      _
    $region27: #{tpu_custom_call.1} parent=1 // pred_check_branch
      %97 = sbr.rel (0) target = $region29
    $region28: #{tpu_custom_call.1} parent=1 // pred_region
      %s99 = ssub.s32 2048, 2048
      %100 = vsyncadd [#allocation12], %s99
      %s101 = sshll.u32 [#allocation13], 4
      %s102 = int_to_ptr.vmem [resolvable:$true] %s101
      %107 = dma.hbm_to_vmem [thread:$0]  %s6, 2048, %s102, [#allocation12], 128, 128, 8
    $region29: #{tpu_custom_call.1} parent=1 // pred_fallthru
      _
    // Predicated region
    $region30: #{tpu_custom_call.1} parent=1 // pred_check
      _
    $region31: #{tpu_custom_call.1} parent=1 // pred_check_branch
      %109 = sbr.rel (0) target = $region33
    $region32: #{tpu_custom_call.1} parent=1 // pred_region
      %s111 = ssub.s32 32, 32
      %112 = vsyncadd [#allocation15], %s111
      %s114 = sshll.u32 [#allocation14], 4
      %s115 = int_to_ptr.vmem [resolvable:$true] %s114
      %117 = dma.hbm_to_vmem [thread:$0]  %s7, 32, %s115, [#allocation15]
    $region33: #{tpu_custom_call.1} parent=1 // pred_fallthru
      _
    // Predicated region
    $region34: #{tpu_custom_call.1} parent=1 // pred_check
      _
    $region35: #{tpu_custom_call.1} parent=1 // pred_check_branch
      %119 = sbr.rel (0) target = $region37
    $region36: #{tpu_custom_call.1} parent=1 // pred_region
      %s121 = ssub.s32 1024, 1024
      %122 = vsyncadd [#allocation15], %s121
      %s123 = sshll.u32 [#allocation16], 4
      %s124 = int_to_ptr.vmem [resolvable:$true] %s123
      %129 = dma.hbm_to_vmem [thread:$0]  %s8, 1024, %s124, [#allocation15], 64, 64, 4
    $region37: #{tpu_custom_call.1} parent=1 // pred_fallthru
      _
    // Predicated region
    $region38: #{tpu_custom_call.1} parent=1 // pred_check
      _
    $region39: #{tpu_custom_call.1} parent=1 // pred_check_branch
      %131 = sbr.rel (0) target = $region41
    $region40: #{tpu_custom_call.1} parent=1 // pred_region
      %s133 = ssub.s32 16, 16
      %134 = vsyncadd [#allocation18], %s133
      %s136 = sshll.u32 [#allocation17], 4
      %s137 = int_to_ptr.vmem [resolvable:$true] %s136
      %139 = dma.hbm_to_vmem [thread:$0]  %s9, 16, %s137, [#allocation18]
    $region41: #{tpu_custom_call.1} parent=1 // pred_fallthru
      _
    // Predicated region
    $region42: #{tpu_custom_call.1} parent=1 // pred_check
      _
    $region43: #{tpu_custom_call.1} parent=1 // pred_check_branch
      %141 = sbr.rel (0) target = $region45
    $region44: #{tpu_custom_call.1} parent=1 // pred_region
      %s143 = ssub.s32 1024, 1024
      %144 = vsyncadd [#allocation18], %s143
      %s145 = sshll.u32 [#allocation19], 4
      %s146 = int_to_ptr.vmem [resolvable:$true] %s145
      %151 = dma.hbm_to_vmem [thread:$0]  %s10, 1024, %s146, [#allocation18], 64, 64, 4
    $region45: #{tpu_custom_call.1} parent=1 // pred_fallthru
      _
    // Predicated region
    $region46: #{tpu_custom_call.1} parent=1 // pred_check
      _
    $region47: #{tpu_custom_call.1} parent=1 // pred_check_branch
      %153 = sbr.rel (0) target = $region49
    $region48: #{tpu_custom_call.1} parent=1 // pred_region
      %s155 = ssub.s32 16, 16
      %156 = vsyncadd [#allocation21], %s155
      %s158 = sshll.u32 [#allocation20], 4
      %s159 = int_to_ptr.vmem [resolvable:$true] %s158
      %161 = dma.hbm_to_vmem [thread:$0]  %s11, 16, %s159, [#allocation21]
    $region49: #{tpu_custom_call.1} parent=1 // pred_fallthru
      _
    // Predicated region
    $region50: #{tpu_custom_call.1} parent=1 // pred_check
      _
    $region51: #{tpu_custom_call.1} parent=1 // pred_check_branch
      %163 = sbr.rel (0) target = $region53
    $region52: #{tpu_custom_call.1} parent=1 // pred_region
      %s165 = ssub.s32 1024, 1024
      %166 = vsyncadd [#allocation21], %s165
      %s167 = sshll.u32 [#allocation22], 4
      %s168 = int_to_ptr.vmem [resolvable:$true] %s167
      %173 = dma.hbm_to_vmem [thread:$0]  %s12, 1024, %s168, [#allocation21], 64, 64, 4
    $region53: #{tpu_custom_call.1} parent=1 // pred_fallthru
      _
    // Predicated region
    $region54: #{tpu_custom_call.1} parent=1 // pred_check
      _
    $region55: #{tpu_custom_call.1} parent=1 // pred_check_branch
      %175 = sbr.rel (0) target = $region57
    $region56: #{tpu_custom_call.1} parent=1 // pred_region
      %s177 = ssub.s32 16, 16
      %178 = vsyncadd [#allocation24], %s177
      %s180 = sshll.u32 [#allocation23], 4
      %s181 = int_to_ptr.vmem [resolvable:$true] %s180
      %183 = dma.hbm_to_vmem [thread:$0]  %s13, 16, %s181, [#allocation24]
    $region57: #{tpu_custom_call.1} parent=1 // pred_fallthru
      _
    // Predicated region
    $region58: #{tpu_custom_call.1} parent=1 // pred_check
      _
    $region59: #{tpu_custom_call.1} parent=1 // pred_check_branch
      %185 = sbr.rel (0) target = $region61
    $region60: #{tpu_custom_call.1} parent=1 // pred_region
      %186 = dma.done [#allocation3], 128
    $region61: #{tpu_custom_call.1} parent=1 // pred_fallthru
      _
    // Predicated region
    $region62: #{tpu_custom_call.1} parent=1 // pred_check
      _
    $region63: #{tpu_custom_call.1} parent=1 // pred_check_branch
      %188 = sbr.rel (0) target = $region65
    $region64: #{tpu_custom_call.1} parent=1 // pred_region
      %189 = dma.done [#allocation6], 128
    $region65: #{tpu_custom_call.1} parent=1 // pred_fallthru
      _
    // Predicated region
    $region66: #{tpu_custom_call.1} parent=1 // pred_check
      _
    $region67: #{tpu_custom_call.1} parent=1 // pred_check_branch
      %191 = sbr.rel (0) target = $region69
    $region68: #{tpu_custom_call.1} parent=1 // pred_region
      %192 = dma.done [#allocation6], 128
    $region69: #{tpu_custom_call.1} parent=1 // pred_fallthru
      _
    // Predicated region
    $region70: #{tpu_custom_call.1} parent=1 // pred_check
      _
    $region71: #{tpu_custom_call.1} parent=1 // pred_check_branch
      %194 = sbr.rel (0) target = $region73
    $region72: #{tpu_custom_call.1} parent=1 // pred_region
      %195 = dma.done [#allocation9], 16
    $region73: #{tpu_custom_call.1} parent=1 // pred_fallthru
      _
    // Predicated region
    $region74: #{tpu_custom_call.1} parent=1 // pred_check
      _
    $region75: #{tpu_custom_call.1} parent=1 // pred_check_branch
      %197 = sbr.rel (0) target = $region77
    $region76: #{tpu_custom_call.1} parent=1 // pred_region
      %198 = dma.done [#allocation9], 1024
    $region77: #{tpu_custom_call.1} parent=1 // pred_fallthru
      _
    // Predicated region
    $region78: #{tpu_custom_call.1} parent=1 // pred_check
      _
    $region79: #{tpu_custom_call.1} parent=1 // pred_check_branch
      %200 = sbr.rel (0) target = $region81
    $region80: #{tpu_custom_call.1} parent=1 // pred_region
      %201 = dma.done [#allocation12], 16
    $region81: #{tpu_custom_call.1} parent=1 // pred_fallthru
      _
    // Predicated region
    $region82: #{tpu_custom_call.1} parent=1 // pred_check
      _
    $region83: #{tpu_custom_call.1} parent=1 // pred_check_branch
      %203 = sbr.rel (0) target = $region85
    $region84: #{tpu_custom_call.1} parent=1 // pred_region
      %204 = dma.done [#allocation12], 2048
    $region85: #{tpu_custom_call.1} parent=1 // pred_fallthru
      _
    // Predicated region
    $region86: #{tpu_custom_call.1} parent=1 // pred_check
      _
    $region87: #{tpu_custom_call.1} parent=1 // pred_check_branch
      %206 = sbr.rel (0) target = $region89
    $region88: #{tpu_custom_call.1} parent=1 // pred_region
      %207 = dma.done [#allocation15], 32
    $region89: #{tpu_custom_call.1} parent=1 // pred_fallthru
      _
    // Predicated region
    $region90: #{tpu_custom_call.1} parent=1 // pred_check
      _
    $region91: #{tpu_custom_call.1} parent=1 // pred_check_branch
      %209 = sbr.rel (0) target = $region93
    $region92: #{tpu_custom_call.1} parent=1 // pred_region
      %210 = dma.done [#allocation15], 1024
    $region93: #{tpu_custom_call.1} parent=1 // pred_fallthru
      _
    // Predicated region
    $region94: #{tpu_custom_call.1} parent=1 // pred_check
      _
    $region95: #{tpu_custom_call.1} parent=1 // pred_check_branch
      %212 = sbr.rel (0) target = $region97
    $region96: #{tpu_custom_call.1} parent=1 // pred_region
      %213 = dma.done [#allocation18], 16
    $region97: #{tpu_custom_call.1} parent=1 // pred_fallthru
      _
    // Predicated region
    $region98: #{tpu_custom_call.1} parent=1 // pred_check
      _
    $region99: #{tpu_custom_call.1} parent=1 // pred_check_branch
      %215 = sbr.rel (0) target = $region101
    $region100: #{tpu_custom_call.1} parent=1 // pred_region
      %216 = dma.done [#allocation18], 1024
    $region101: #{tpu_custom_call.1} parent=1 // pred_fallthru
      _
    // Predicated region
    $region102: #{tpu_custom_call.1} parent=1 // pred_check
      _
    $region103: #{tpu_custom_call.1} parent=1 // pred_check_branch
      %218 = sbr.rel (0) target = $region105
    $region104: #{tpu_custom_call.1} parent=1 // pred_region
      %219 = dma.done [#allocation21], 16
    $region105: #{tpu_custom_call.1} parent=1 // pred_fallthru
      _
    // Predicated region
    $region106: #{tpu_custom_call.1} parent=1 // pred_check
      _
    $region107: #{tpu_custom_call.1} parent=1 // pred_check_branch
      %221 = sbr.rel (0) target = $region109
    $region108: #{tpu_custom_call.1} parent=1 // pred_region
      %222 = dma.done [#allocation21], 1024
    $region109: #{tpu_custom_call.1} parent=1 // pred_fallthru
      _
    // Predicated region
    $region110: #{tpu_custom_call.1} parent=1 // pred_check
      _
    $region111: #{tpu_custom_call.1} parent=1 // pred_check_branch
      %224 = sbr.rel (0) target = $region113
    $region112: #{tpu_custom_call.1} parent=1 // pred_region
      %225 = dma.done [#allocation24], 16
    $region113: #{tpu_custom_call.1} parent=1 // pred_fallthru
      _
    %v227 = vld [vmem:[#allocation2] sm:$0xf]
    %v228 = vld [vmem:[#allocation2 + $0x4] sm:$0xf]
    %v229 = vld [vmem:[#allocation7] sm:$0xf]
    %v230 = vld [vmem:[#allocation7 + $0x4] sm:$0xf]
    %v231 = vld [vmem:[#allocation8] sm:$0x1]
    %v233 = vlaneseq
    %v234 = vshrl.u32 %v233, 7
    %v235 = vsub.s32 0, %v234
    %v236 = vrot.slane %v231, %v235
    %v240 = vunpack.c.l.b16 %v227
    %v241 = vunpack.c.l.b16 %v228
    %v242 = vpack.c.b16 %v241, %v240
    %v245 = vunpack.c.l.b16 %v229
    %v246 = vunpack.c.l.b16 %v230
    %v247 = vpack.c.b16 %v246, %v245
    %vm249 = vcmask 130048
    %v251 = vsel %vm249, %v242, 0
    %253 = vmatprep.subr.bf16.mxu0 0
    %254 = vmatpush1.bf16.msra.mxu0 %v247
    %255 = vmatprep.subr.bf16.mxu0 0
    %256 = vmatpush1.bf16.msra.mxu0 0
    %257 = vmatprep.subr.bf16.mxu0 0
    %258 = vmatpush1.bf16.msra.mxu0 0
    %259 = vmatprep.subr.bf16.mxu0 0
    %260 = vmatpush1.bf16.msra.mxu0 0
    %261 = vmatprep.subr.bf16.mxu0 0
    %262 = vmatpush1.bf16.msra.mxu0 0
    %263 = vmatprep.subr.bf16.mxu0 0
    %264 = vmatpush1.bf16.msra.mxu0 0
    %265 = vmatprep.subr.bf16.mxu0 0
    %266 = vmatpush1.bf16.msra.mxu0 0
    %267 = vmatprep.subr.bf16.mxu0 0
    %268 = vmatpush1.bf16.msra.mxu0 0
    %269 = vmatprep.subr.bf16.mxu0 0
    %270 = vmatpush1.bf16.msra.mxu0 0
    %271 = vmatprep.subr.bf16.mxu0 0
    %272 = vmatpush1.bf16.msra.mxu0 0
    %273 = vmatprep.subr.bf16.mxu0 0
    %274 = vmatpush1.bf16.msra.mxu0 0
    %275 = vmatprep.subr.bf16.mxu0 0
    %276 = vmatpush1.bf16.msra.mxu0 0
    %277 = vmatprep.subr.bf16.mxu0 0
    %278 = vmatpush1.bf16.msra.mxu0 0
    %279 = vmatprep.subr.bf16.mxu0 0
    %280 = vmatpush1.bf16.msra.mxu0 0
    %281 = vmatprep.subr.bf16.mxu0 0
    %282 = vmatpush1.bf16.msra.mxu0 0
    %283 = vmatprep.subr.bf16.mxu0 0
    %284 = vmatpush1.bf16.msra.mxu0 0
    %285 = vmatprep.mubr.bf16.mxu0 0
    %286 = vmatmul.mubr.bf16.gmra.mrb[0].mxu0 %v251
    %v287 = vpop.f32.mrb[0].mxu0
    %v288 = vadd.f32 %v236, %v287
    %v289 = vpop.f32.mrb[0].mxu0
    %v290 = vpop.f32.mrb[0].mxu0
    %v291 = vadd.f32 %v236, %v290
    %v292 = vpop.f32.mrb[0].mxu0
    %293 = vdwg.mxu0
    %v294 = vmul.f32 %v288, 0.5
    %v295 = vmul.f32 %v291, 0.5
    %v296 = vtanh.pop %v294
    %v297 = vtanh.pop %v295
    %v298 = vmul.f32 %v296, 0.5
    %v299 = vmul.f32 %v297, 0.5
    %v300 = vadd.f32 %v298, 0.5
    %v301 = vadd.f32 %v299, 0.5
    %v302 = vpack.c.bf16 %v301, %v300
    %v303 = vld [vmem:[#allocation10] sm:$0xf]
    %v304 = vld [vmem:[#allocation10 + $0x4] sm:$0xf]
    %v305 = vld [vmem:[#allocation10 + $0x8] sm:$0xf]
    %v306 = vld [vmem:[#allocation10 + $0xc] sm:$0xf]
    %v307 = vld [vmem:[#allocation10 + $0x10] sm:$0xf]
    %v308 = vld [vmem:[#allocation10 + $0x14] sm:$0xf]
    %v309 = vld [vmem:[#allocation10 + $0x18] sm:$0xf]
    %v310 = vld [vmem:[#allocation10 + $0x1c] sm:$0xf]
    %v311 = vld [vmem:[#allocation10 + $0x20] sm:$0xf]
    %v312 = vld [vmem:[#allocation10 + $0x24] sm:$0xf]
    %v313 = vld [vmem:[#allocation10 + $0x28] sm:$0xf]
    %v314 = vld [vmem:[#allocation10 + $0x2c] sm:$0xf]
    %v315 = vld [vmem:[#allocation10 + $0x30] sm:$0xf]
    %v316 = vld [vmem:[#allocation10 + $0x34] sm:$0xf]
    %v317 = vld [vmem:[#allocation10 + $0x38] sm:$0xf]
    %v318 = vld [vmem:[#allocation10 + $0x3c] sm:$0xf]
    %v319 = vld [vmem:[#allocation11] sm:$0x1]
    %v321 = vlaneseq
    %v322 = vshrl.u32 %v321, 7
    %v323 = vsub.s32 0, %v322
    %v324 = vrot.slane %v319, %v323
    %v342 = vunpack.c.l.b16 %v303
    %v343 = vunpack.c.l.b16 %v304
    %v344 = vunpack.c.l.b16 %v305
    %v345 = vunpack.c.l.b16 %v306
    %v346 = vunpack.c.l.b16 %v307
    %v347 = vunpack.c.l.b16 %v308
    %v348 = vunpack.c.l.b16 %v309
    %v349 = vunpack.c.l.b16 %v310
    %v350 = vunpack.c.l.b16 %v311
    %v351 = vunpack.c.l.b16 %v312
    %v352 = vunpack.c.l.b16 %v313
    %v353 = vunpack.c.l.b16 %v314
    %v354 = vunpack.c.l.b16 %v315
    %v355 = vunpack.c.l.b16 %v316
    %v356 = vunpack.c.l.b16 %v317
    %v357 = vunpack.c.l.b16 %v318
    %v358 = vpack.c.b16 %v343, %v342
    %v359 = vpack.c.b16 %v345, %v344
    %v360 = vpack.c.b16 %v347, %v346
    %v361 = vpack.c.b16 %v349, %v348
    %v362 = vpack.c.b16 %v351, %v350
    %v363 = vpack.c.b16 %v353, %v352
    %v364 = vpack.c.b16 %v355, %v354
    %v365 = vpack.c.b16 %v357, %v356
    %374 = vmatprep.subr.bf16.mxu0 0
    %375 = vmatpush1.bf16.msra.mxu0 %v358
    %376 = vmatprep.subr.bf16.mxu0 0
    %377 = vmatpush1.bf16.msra.mxu0 %v359
    %378 = vmatprep.subr.bf16.mxu0 0
    %379 = vmatpush1.bf16.msra.mxu0 %v360
    %380 = vmatprep.subr.bf16.mxu0 0
    %381 = vmatpush1.bf16.msra.mxu0 %v361
    %382 = vmatprep.subr.bf16.mxu0 0
    %383 = vmatpush1.bf16.msra.mxu0 %v362
    %384 = vmatprep.subr.bf16.mxu0 0
    %385 = vmatpush1.bf16.msra.mxu0 %v363
    %386 = vmatprep.subr.bf16.mxu0 0
    %387 = vmatpush1.bf16.msra.mxu0 %v364
    %388 = vmatprep.subr.bf16.mxu0 0
    %389 = vmatpush1.bf16.msra.mxu0 %v365
    %390 = vmatprep.subr.bf16.mxu0 0
    %391 = vmatpush1.bf16.msra.mxu0 0
    %392 = vmatprep.subr.bf16.mxu0 0
    %393 = vmatpush1.bf16.msra.mxu0 0
    %394 = vmatprep.subr.bf16.mxu0 0
    %395 = vmatpush1.bf16.msra.mxu0 0
    %396 = vmatprep.subr.bf16.mxu0 0
    %397 = vmatpush1.bf16.msra.mxu0 0
    %398 = vmatprep.subr.bf16.mxu0 0
    %399 = vmatpush1.bf16.msra.mxu0 0
    %400 = vmatprep.subr.bf16.mxu0 0
    %401 = vmatpush1.bf16.msra.mxu0 0
    %402 = vmatprep.subr.bf16.mxu0 0
    %403 = vmatpush1.bf16.msra.mxu0 0
    %404 = vmatprep.subr.bf16.mxu0 0
    %405 = vmatpush1.bf16.msra.mxu0 0
    %406 = vmatprep.mubr.bf16.mxu0 0
    %407 = vmatmul.mubr.bf16.gmra.mrb[0].mxu0 %v302
    %v408 = vpop.f32.mrb[0].mxu0
    %v409 = vadd.f32 %v324, %v408
    %v410 = vpop.f32.mrb[0].mxu0
    %v411 = vpop.f32.mrb[0].mxu0
    %v412 = vadd.f32 %v324, %v411
    %v413 = vpop.f32.mrb[0].mxu0
    %414 = vdwg.mxu0
    %v415 = vmul.f32 %v409, 0.5
    %v416 = vmul.f32 %v412, 0.5
    %v417 = vtanh.pop %v415
    %v418 = vtanh.pop %v416
    %v419 = vmul.f32 %v417, 0.5
    %v420 = vmul.f32 %v418, 0.5
    %v421 = vadd.f32 %v419, 0.5
    %v422 = vadd.f32 %v420, 0.5
    %v423 = vpack.c.bf16 %v422, %v421
    %v424 = vld [vmem:[#allocation13] sm:$0xff]
    %v425 = vld [vmem:[#allocation13 + $0x8] sm:$0xff]
    %v426 = vld [vmem:[#allocation13 + $0x10] sm:$0xff]
    %v427 = vld [vmem:[#allocation13 + $0x18] sm:$0xff]
    %v428 = vld [vmem:[#allocation13 + $0x20] sm:$0xff]
    %v429 = vld [vmem:[#allocation13 + $0x28] sm:$0xff]
    %v430 = vld [vmem:[#allocation13 + $0x30] sm:$0xff]
    %v431 = vld [vmem:[#allocation13 + $0x38] sm:$0xff]
    %v432 = vld [vmem:[#allocation13 + $0x40] sm:$0xff]
    %v433 = vld [vmem:[#allocation13 + $0x48] sm:$0xff]
    %v434 = vld [vmem:[#allocation13 + $0x50] sm:$0xff]
    %v435 = vld [vmem:[#allocation13 + $0x58] sm:$0xff]
    %v436 = vld [vmem:[#allocation13 + $0x60] sm:$0xff]
    %v437 = vld [vmem:[#allocation13 + $0x68] sm:$0xff]
    %v438 = vld [vmem:[#allocation13 + $0x70] sm:$0xff]
    %v439 = vld [vmem:[#allocation13 + $0x78] sm:$0xff]
    %v440 = vld [vmem:[#allocation14] sm:$0x3]
    %v442 = vlaneseq
    %v443 = vshrl.u32 %v442, 7
    %v444 = vsub.s32 0, %v443
    %v445 = vrot.slane %v440, %v444
    %v446 = vlaneseq
    %v447 = vshrl.u32 %v446, 7
    %v448 = vsub.s32 1, %v447
    %v449 = vrot.slane %v440, %v448
    %v468 = vunpack.c.l.b16 %v424
    %v469 = vunpack.c.h.b16 %v424
    %v470 = vunpack.c.l.b16 %v425
    %v471 = vunpack.c.h.b16 %v425
    %v472 = vunpack.c.l.b16 %v426
    %v473 = vunpack.c.h.b16 %v426
    %v474 = vunpack.c.l.b16 %v427
    %v475 = vunpack.c.h.b16 %v427
    %v476 = vunpack.c.l.b16 %v428
    %v477 = vunpack.c.h.b16 %v428
    %v478 = vunpack.c.l.b16 %v429
    %v479 = vunpack.c.h.b16 %v429
    %v480 = vunpack.c.l.b16 %v430
    %v481 = vunpack.c.h.b16 %v430
    %v482 = vunpack.c.l.b16 %v431
    %v483 = vunpack.c.h.b16 %v431
    %v484 = vunpack.c.l.b16 %v432
    %v485 = vunpack.c.h.b16 %v432
    %v486 = vunpack.c.l.b16 %v433
    %v487 = vunpack.c.h.b16 %v433
    %v488 = vunpack.c.l.b16 %v434
    %v489 = vunpack.c.h.b16 %v434
    %v490 = vunpack.c.l.b16 %v435
    %v491 = vunpack.c.h.b16 %v435
    %v492 = vunpack.c.l.b16 %v436
    %v493 = vunpack.c.h.b16 %v436
    %v494 = vunpack.c.l.b16 %v437
    %v495 = vunpack.c.h.b16 %v437
    %v496 = vunpack.c.l.b16 %v438
    %v497 = vunpack.c.h.b16 %v438
    %v498 = vunpack.c.l.b16 %v439
    %v499 = vunpack.c.h.b16 %v439
    %v500 = vpack.c.b16 %v470, %v468
    %v501 = vpack.c.b16 %v471, %v469
    %v502 = vpack.c.b16 %v474, %v472
    %v503 = vpack.c.b16 %v475, %v473
    %v504 = vpack.c.b16 %v478, %v476
    %v505 = vpack.c.b16 %v479, %v477
    %v506 = vpack.c.b16 %v482, %v480
    %v507 = vpack.c.b16 %v483, %v481
    %v508 = vpack.c.b16 %v486, %v484
    %v509 = vpack.c.b16 %v487, %v485
    %v510 = vpack.c.b16 %v490, %v488
    %v511 = vpack.c.b16 %v491, %v489
    %v512 = vpack.c.b16 %v494, %v492
    %v513 = vpack.c.b16 %v495, %v493
    %v514 = vpack.c.b16 %v498, %v496
    %v515 = vpack.c.b16 %v499, %v497
    %532 = vmatprep.subr.bf16.mxu0 %v501
    %533 = vmatpush1.bf16.msra.mxu0 %v500
    %534 = vmatprep.subr.bf16.mxu0 %v503
    %535 = vmatpush1.bf16.msra.mxu0 %v502
    %536 = vmatprep.subr.bf16.mxu0 %v505
    %537 = vmatpush1.bf16.msra.mxu0 %v504
    %538 = vmatprep.subr.bf16.mxu0 %v507
    %539 = vmatpush1.bf16.msra.mxu0 %v506
    %540 = vmatprep.subr.bf16.mxu0 %v509
    %541 = vmatpush1.bf16.msra.mxu0 %v508
    %542 = vmatprep.subr.bf16.mxu0 %v511
    %543 = vmatpush1.bf16.msra.mxu0 %v510
    %544 = vmatprep.subr.bf16.mxu0 %v513
    %545 = vmatpush1.bf16.msra.mxu0 %v512
    %546 = vmatprep.subr.bf16.mxu0 %v515
    %547 = vmatpush1.bf16.msra.mxu0 %v514
    %548 = vmatprep.subr.bf16.mxu0 0
    %549 = vmatpush1.bf16.msra.mxu0 0
    %550 = vmatprep.subr.bf16.mxu0 0
    %551 = vmatpush1.bf16.msra.mxu0 0
    %552 = vmatprep.subr.bf16.mxu0 0
    %553 = vmatpush1.bf16.msra.mxu0 0
    %554 = vmatprep.subr.bf16.mxu0 0
    %555 = vmatpush1.bf16.msra.mxu0 0
    %556 = vmatprep.subr.bf16.mxu0 0
    %557 = vmatpush1.bf16.msra.mxu0 0
    %558 = vmatprep.subr.bf16.mxu0 0
    %559 = vmatpush1.bf16.msra.mxu0 0
    %560 = vmatprep.subr.bf16.mxu0 0
    %561 = vmatpush1.bf16.msra.mxu0 0
    %562 = vmatprep.subr.bf16.mxu0 0
    %563 = vmatpush1.bf16.msra.mxu0 0
    %564 = vmatprep.mubr.bf16.mxu0 0
    %565 = vmatmul.mubr.bf16.gmra.mrb[0].mxu0 %v423
    %v566 = vpop.f32.mrb[0].mxu0
    %v567 = vadd.f32 %v445, %v566
    %v568 = vpop.f32.mrb[0].mxu0
    %v569 = vadd.f32 %v449, %v568
    %v570 = vpop.f32.mrb[0].mxu0
    %v571 = vadd.f32 %v445, %v570
    %v572 = vpop.f32.mrb[0].mxu0
    %v573 = vadd.f32 %v449, %v572
    %574 = vdwg.mxu0
    %v575 = vmul.f32 %v569, 1.442695
    %v576 = vpow.pop %v575
    %v577 = vmul.f32 %v573, 1.442695
    %v578 = vpow.pop %v577
    %v579 = vld [vmem:[#allocation5] sm:$0xf]
    %v580 = vld [vmem:[#allocation5 + $0x4] sm:$0xf]
    %v581 = vunpack.c.l.bf16 %v579
    %v582 = vunpack.c.l.bf16 %v580
    %v583 = vmul.f32 %v576, %v581
    %v584 = vmul.f32 %v578, %v582
    %v585 = vadd.f32 %v567, %v583
    %v586 = vadd.f32 %v571, %v584
    %v587 = vpack.c.bf16 %v586, %v585
    %v588 = vld [vmem:[#allocation16] sm:$0xf]
    %v589 = vld [vmem:[#allocation16 + $0x4] sm:$0xf]
    %v590 = vld [vmem:[#allocation16 + $0x8] sm:$0xf]
    %v591 = vld [vmem:[#allocation16 + $0xc] sm:$0xf]
    %v592 = vld [vmem:[#allocation16 + $0x10] sm:$0xf]
    %v593 = vld [vmem:[#allocation16 + $0x14] sm:$0xf]
    %v594 = vld [vmem:[#allocation16 + $0x18] sm:$0xf]
    %v595 = vld [vmem:[#allocation16 + $0x1c] sm:$0xf]
    %v596 = vld [vmem:[#allocation16 + $0x20] sm:$0xf]
    %v597 = vld [vmem:[#allocation16 + $0x24] sm:$0xf]
    %v598 = vld [vmem:[#allocation16 + $0x28] sm:$0xf]
    %v599 = vld [vmem:[#allocation16 + $0x2c] sm:$0xf]
    %v600 = vld [vmem:[#allocation16 + $0x30] sm:$0xf]
    %v601 = vld [vmem:[#allocation16 + $0x34] sm:$0xf]
    %v602 = vld [vmem:[#allocation16 + $0x38] sm:$0xf]
    %v603 = vld [vmem:[#allocation16 + $0x3c] sm:$0xf]
    %v604 = vld [vmem:[#allocation17] sm:$0x1]
    %v606 = vlaneseq
    %v607 = vshrl.u32 %v606, 7
    %v608 = vsub.s32 0, %v607
    %v609 = vrot.slane %v604, %v608
    %v627 = vunpack.c.l.b16 %v588
    %v628 = vunpack.c.l.b16 %v589
    %v629 = vunpack.c.l.b16 %v590
    %v630 = vunpack.c.l.b16 %v591
    %v631 = vunpack.c.l.b16 %v592
    %v632 = vunpack.c.l.b16 %v593
    %v633 = vunpack.c.l.b16 %v594
    %v634 = vunpack.c.l.b16 %v595
    %v635 = vunpack.c.l.b16 %v596
    %v636 = vunpack.c.l.b16 %v597
    %v637 = vunpack.c.l.b16 %v598
    %v638 = vunpack.c.l.b16 %v599
    %v639 = vunpack.c.l.b16 %v600
    %v640 = vunpack.c.l.b16 %v601
    %v641 = vunpack.c.l.b16 %v602
    %v642 = vunpack.c.l.b16 %v603
    %v643 = vpack.c.b16 %v628, %v627
    %v644 = vpack.c.b16 %v630, %v629
    %v645 = vpack.c.b16 %v632, %v631
    %v646 = vpack.c.b16 %v634, %v633
    %v647 = vpack.c.b16 %v636, %v635
    %v648 = vpack.c.b16 %v638, %v637
    %v649 = vpack.c.b16 %v640, %v639
    %v650 = vpack.c.b16 %v642, %v641
    %659 = vmatprep.subr.bf16.mxu0 0
    %660 = vmatpush1.bf16.msra.mxu0 %v643
    %661 = vmatprep.subr.bf16.mxu0 0
    %662 = vmatpush1.bf16.msra.mxu0 %v644
    %663 = vmatprep.subr.bf16.mxu0 0
    %664 = vmatpush1.bf16.msra.mxu0 %v645
    %665 = vmatprep.subr.bf16.mxu0 0
    %666 = vmatpush1.bf16.msra.mxu0 %v646
    %667 = vmatprep.subr.bf16.mxu0 0
    %668 = vmatpush1.bf16.msra.mxu0 %v647
    %669 = vmatprep.subr.bf16.mxu0 0
    %670 = vmatpush1.bf16.msra.mxu0 %v648
    %671 = vmatprep.subr.bf16.mxu0 0
    %672 = vmatpush1.bf16.msra.mxu0 %v649
    %673 = vmatprep.subr.bf16.mxu0 0
    %674 = vmatpush1.bf16.msra.mxu0 %v650
    %675 = vmatprep.subr.bf16.mxu0 0
    %676 = vmatpush1.bf16.msra.mxu0 0
    %677 = vmatprep.subr.bf16.mxu0 0
    %678 = vmatpush1.bf16.msra.mxu0 0
    %679 = vmatprep.subr.bf16.mxu0 0
    %680 = vmatpush1.bf16.msra.mxu0 0
    %681 = vmatprep.subr.bf16.mxu0 0
    %682 = vmatpush1.bf16.msra.mxu0 0
    %683 = vmatprep.subr.bf16.mxu0 0
    %684 = vmatpush1.bf16.msra.mxu0 0
    %685 = vmatprep.subr.bf16.mxu0 0
    %686 = vmatpush1.bf16.msra.mxu0 0
    %687 = vmatprep.subr.bf16.mxu0 0
    %688 = vmatpush1.bf16.msra.mxu0 0
    %689 = vmatprep.subr.bf16.mxu0 0
    %690 = vmatpush1.bf16.msra.mxu0 0
    %691 = vmatprep.mubr.bf16.mxu0 0
    %692 = vmatmul.mubr.bf16.gmra.mrb[0].mxu0 %v587
    %v693 = vpop.f32.mrb[0].mxu0
    %v694 = vadd.f32 %v609, %v693
    %v695 = vpop.f32.mrb[0].mxu0
    %v696 = vpop.f32.mrb[0].mxu0
    %v697 = vadd.f32 %v609, %v696
    %v698 = vpop.f32.mrb[0].mxu0
    %699 = vdwg.mxu0
    %v700 = vpack.c.bf16 %v697, %v694
    %v701 = vld [vmem:[#allocation19] sm:$0xf]
    %v702 = vld [vmem:[#allocation19 + $0x4] sm:$0xf]
    %v703 = vld [vmem:[#allocation19 + $0x8] sm:$0xf]
    %v704 = vld [vmem:[#allocation19 + $0xc] sm:$0xf]
    %v705 = vld [vmem:[#allocation19 + $0x10] sm:$0xf]
    %v706 = vld [vmem:[#allocation19 + $0x14] sm:$0xf]
    %v707 = vld [vmem:[#allocation19 + $0x18] sm:$0xf]
    %v708 = vld [vmem:[#allocation19 + $0x1c] sm:$0xf]
    %v709 = vld [vmem:[#allocation19 + $0x20] sm:$0xf]
    %v710 = vld [vmem:[#allocation19 + $0x24] sm:$0xf]
    %v711 = vld [vmem:[#allocation19 + $0x28] sm:$0xf]
    %v712 = vld [vmem:[#allocation19 + $0x2c] sm:$0xf]
    %v713 = vld [vmem:[#allocation19 + $0x30] sm:$0xf]
    %v714 = vld [vmem:[#allocation19 + $0x34] sm:$0xf]
    %v715 = vld [vmem:[#allocation19 + $0x38] sm:$0xf]
    %v716 = vld [vmem:[#allocation19 + $0x3c] sm:$0xf]
    %v717 = vld [vmem:[#allocation20] sm:$0x1]
    %v719 = vlaneseq
    %v720 = vshrl.u32 %v719, 7
    %v721 = vsub.s32 0, %v720
    %v722 = vrot.slane %v717, %v721
    %v740 = vunpack.c.l.b16 %v701
    %v741 = vunpack.c.l.b16 %v702
    %v742 = vunpack.c.l.b16 %v703
    %v743 = vunpack.c.l.b16 %v704
    %v744 = vunpack.c.l.b16 %v705
    %v745 = vunpack.c.l.b16 %v706
    %v746 = vunpack.c.l.b16 %v707
    %v747 = vunpack.c.l.b16 %v708
    %v748 = vunpack.c.l.b16 %v709
    %v749 = vunpack.c.l.b16 %v710
    %v750 = vunpack.c.l.b16 %v711
    %v751 = vunpack.c.l.b16 %v712
    %v752 = vunpack.c.l.b16 %v713
    %v753 = vunpack.c.l.b16 %v714
    %v754 = vunpack.c.l.b16 %v715
    %v755 = vunpack.c.l.b16 %v716
    %v756 = vpack.c.b16 %v741, %v740
    %v757 = vpack.c.b16 %v743, %v742
    %v758 = vpack.c.b16 %v745, %v744
    %v759 = vpack.c.b16 %v747, %v746
    %v760 = vpack.c.b16 %v749, %v748
    %v761 = vpack.c.b16 %v751, %v750
    %v762 = vpack.c.b16 %v753, %v752
    %v763 = vpack.c.b16 %v755, %v754
    %772 = vmatprep.subr.bf16.mxu0 0
    %773 = vmatpush1.bf16.msra.mxu0 %v756
    %774 = vmatprep.subr.bf16.mxu0 0
    %775 = vmatpush1.bf16.msra.mxu0 %v757
    %776 = vmatprep.subr.bf16.mxu0 0
    %777 = vmatpush1.bf16.msra.mxu0 %v758
    %778 = vmatprep.subr.bf16.mxu0 0
    %779 = vmatpush1.bf16.msra.mxu0 %v759
    %780 = vmatprep.subr.bf16.mxu0 0
    %781 = vmatpush1.bf16.msra.mxu0 %v760
    %782 = vmatprep.subr.bf16.mxu0 0
    %783 = vmatpush1.bf16.msra.mxu0 %v761
    %784 = vmatprep.subr.bf16.mxu0 0
    %785 = vmatpush1.bf16.msra.mxu0 %v762
    %786 = vmatprep.subr.bf16.mxu0 0
    %787 = vmatpush1.bf16.msra.mxu0 %v763
    %788 = vmatprep.subr.bf16.mxu0 0
    %789 = vmatpush1.bf16.msra.mxu0 0
    %790 = vmatprep.subr.bf16.mxu0 0
    %791 = vmatpush1.bf16.msra.mxu0 0
    %792 = vmatprep.subr.bf16.mxu0 0
    %793 = vmatpush1.bf16.msra.mxu0 0
    %794 = vmatprep.subr.bf16.mxu0 0
    %795 = vmatpush1.bf16.msra.mxu0 0
    %796 = vmatprep.subr.bf16.mxu0 0
    %797 = vmatpush1.bf16.msra.mxu0 0
    %798 = vmatprep.subr.bf16.mxu0 0
    %799 = vmatpush1.bf16.msra.mxu0 0
    %800 = vmatprep.subr.bf16.mxu0 0
    %801 = vmatpush1.bf16.msra.mxu0 0
    %802 = vmatprep.subr.bf16.mxu0 0
    %803 = vmatpush1.bf16.msra.mxu0 0
    %804 = vmatprep.mubr.bf16.mxu0 0
    %805 = vmatmul.mubr.bf16.gmra.mrb[0].mxu0 %v700
    %v806 = vpop.f32.mrb[0].mxu0
    %v807 = vadd.f32 %v722, %v806
    %v808 = vpop.f32.mrb[0].mxu0
    %v809 = vpop.f32.mrb[0].mxu0
    %v810 = vadd.f32 %v722, %v809
    %v811 = vpop.f32.mrb[0].mxu0
    %812 = vdwg.mxu0
    %v813 = vmul.f32 %v807, 0.5
    %v814 = vmul.f32 %v810, 0.5
    %v815 = vtanh.pop %v813
    %v816 = vtanh.pop %v814
    %v817 = vmul.f32 %v815, 0.5
    %v818 = vmul.f32 %v816, 0.5
    %v819 = vadd.f32 %v817, 0.5
    %v820 = vadd.f32 %v818, 0.5
    %v821 = vpack.c.bf16 %v820, %v819
    %v822 = vld [vmem:[#allocation22] sm:$0xf]
    %v823 = vld [vmem:[#allocation22 + $0x4] sm:$0xf]
    %v824 = vld [vmem:[#allocation22 + $0x8] sm:$0xf]
    %v825 = vld [vmem:[#allocation22 + $0xc] sm:$0xf]
    %v826 = vld [vmem:[#allocation22 + $0x10] sm:$0xf]
    %v827 = vld [vmem:[#allocation22 + $0x14] sm:$0xf]
    %v828 = vld [vmem:[#allocation22 + $0x18] sm:$0xf]
    %v829 = vld [vmem:[#allocation22 + $0x1c] sm:$0xf]
    %v830 = vld [vmem:[#allocation22 + $0x20] sm:$0xf]
    %v831 = vld [vmem:[#allocation22 + $0x24] sm:$0xf]
    %v832 = vld [vmem:[#allocation22 + $0x28] sm:$0xf]
    %v833 = vld [vmem:[#allocation22 + $0x2c] sm:$0xf]
    %v834 = vld [vmem:[#allocation22 + $0x30] sm:$0xf]
    %v835 = vld [vmem:[#allocation22 + $0x34] sm:$0xf]
    %v836 = vld [vmem:[#allocation22 + $0x38] sm:$0xf]
    %v837 = vld [vmem:[#allocation22 + $0x3c] sm:$0xf]
    %v838 = vld [vmem:[#allocation23] sm:$0x1]
    %v840 = vlaneseq
    %v841 = vshrl.u32 %v840, 7
    %v842 = vsub.s32 0, %v841
    %v843 = vrot.slane %v838, %v842
    %v861 = vunpack.c.l.b16 %v822
    %v862 = vunpack.c.l.b16 %v823
    %v863 = vunpack.c.l.b16 %v824
    %v864 = vunpack.c.l.b16 %v825
    %v865 = vunpack.c.l.b16 %v826
    %v866 = vunpack.c.l.b16 %v827
    %v867 = vunpack.c.l.b16 %v828
    %v868 = vunpack.c.l.b16 %v829
    %v869 = vunpack.c.l.b16 %v830
    %v870 = vunpack.c.l.b16 %v831
    %v871 = vunpack.c.l.b16 %v832
    %v872 = vunpack.c.l.b16 %v833
    %v873 = vunpack.c.l.b16 %v834
    %v874 = vunpack.c.l.b16 %v835
    %v875 = vunpack.c.l.b16 %v836
    %v876 = vunpack.c.l.b16 %v837
    %v877 = vpack.c.b16 %v862, %v861
    %v878 = vpack.c.b16 %v864, %v863
    %v879 = vpack.c.b16 %v866, %v865
    %v880 = vpack.c.b16 %v868, %v867
    %v881 = vpack.c.b16 %v870, %v869
    %v882 = vpack.c.b16 %v872, %v871
    %v883 = vpack.c.b16 %v874, %v873
    %v884 = vpack.c.b16 %v876, %v875
    %893 = vmatprep.subr.bf16.mxu0 0
    %894 = vmatpush1.bf16.msra.mxu0 %v877
    %895 = vmatprep.subr.bf16.mxu0 0
    %896 = vmatpush1.bf16.msra.mxu0 %v878
    %897 = vmatprep.subr.bf16.mxu0 0
    %898 = vmatpush1.bf16.msra.mxu0 %v879
    %899 = vmatprep.subr.bf16.mxu0 0
    %900 = vmatpush1.bf16.msra.mxu0 %v880
    %901 = vmatprep.subr.bf16.mxu0 0
    %902 = vmatpush1.bf16.msra.mxu0 %v881
    %903 = vmatprep.subr.bf16.mxu0 0
    %904 = vmatpush1.bf16.msra.mxu0 %v882
    %905 = vmatprep.subr.bf16.mxu0 0
    %906 = vmatpush1.bf16.msra.mxu0 %v883
    %907 = vmatprep.subr.bf16.mxu0 0
    %908 = vmatpush1.bf16.msra.mxu0 %v884
    %909 = vmatprep.subr.bf16.mxu0 0
    %910 = vmatpush1.bf16.msra.mxu0 0
    %911 = vmatprep.subr.bf16.mxu0 0
    %912 = vmatpush1.bf16.msra.mxu0 0
    %913 = vmatprep.subr.bf16.mxu0 0
    %914 = vmatpush1.bf16.msra.mxu0 0
    %915 = vmatprep.subr.bf16.mxu0 0
    %916 = vmatpush1.bf16.msra.mxu0 0
    %917 = vmatprep.subr.bf16.mxu0 0
    %918 = vmatpush1.bf16.msra.mxu0 0
    %919 = vmatprep.subr.bf16.mxu0 0
    %920 = vmatpush1.bf16.msra.mxu0 0
    %921 = vmatprep.subr.bf16.mxu0 0
    %922 = vmatpush1.bf16.msra.mxu0 0
    %923 = vmatprep.subr.bf16.mxu0 0
    %924 = vmatpush1.bf16.msra.mxu0 0
    %925 = vmatprep.mubr.bf16.mxu0 0
    %926 = vmatmul.mubr.bf16.gmra.mrb[0].mxu0 %v821
    %v927 = vpop.f32.mrb[0].mxu0
    %v928 = vadd.f32 %v843, %v927
    %v929 = vpop.f32.mrb[0].mxu0
    %v930 = vpop.f32.mrb[0].mxu0
    %v931 = vadd.f32 %v843, %v930
    %v932 = vpop.f32.mrb[0].mxu0
    %933 = vdwg.mxu0
    %v934 = vmul.f32 %v928, 0.5
    %v935 = vmul.f32 %v931, 0.5
    %v936 = vtanh.pop %v934
    %v937 = vtanh.pop %v935
    %v938 = vmul.f32 %v936, 0.5
    %v939 = vmul.f32 %v937, 0.5
    %v940 = vadd.f32 %v938, 0.5
    %v941 = vadd.f32 %v939, 0.5
    %942 = vst.msk [vmem:[#allocation25] sm:$0xff] %vm249, %v940
    %943 = vst.msk [vmem:[#allocation25 + $0x8] sm:$0xff] %vm249, %v941
    // Predicated region
    $region114: #{tpu_custom_call.1} parent=1 // pred_check
      _
    $region115: #{tpu_custom_call.1} parent=1 // pred_check_branch
      %945 = sbr.rel (0) target = $region117
    $region116: #{tpu_custom_call.1} parent=1 // pred_region
      %s947 = ssub.s32 256, 256
      %948 = vsyncadd [#allocation4], %s947
      %s949 = sshll.u32 [#allocation25], 4
      %s950 = int_to_ptr.vmem [resolvable:$true] %s949
      %955 = dma.vmem_to_hbm [thread:$0]  %s950, 256, %s14, [#allocation4], 128, 128, 8
    $region117: #{tpu_custom_call.1} parent=1 // pred_fallthru
      _
    // Predicated region
    $region118: #{tpu_custom_call.1} parent=1 // pred_check
      _
    $region119: #{tpu_custom_call.1} parent=1 // pred_check_branch
      %957 = sbr.rel (0) target = $region121
    $region120: #{tpu_custom_call.1} parent=1 // pred_region
      %958 = dma.done [#allocation4], 256
    $region121: #{tpu_custom_call.1} parent=1 // pred_fallthru
      _
    %959 = vsyncpa [#allocation3], 1
    %960 = vsyncpa [#allocation6], 1
    %961 = vsyncpa [#allocation9], 1
    %962 = vsyncpa [#allocation12], 1
    %963 = vsyncpa [#allocation15], 1
    %964 = vsyncpa [#allocation18], 1
    %965 = vsyncpa [#allocation21], 1
    %966 = vsyncpa [#allocation24], 1
    %967 = vsyncpa [#allocation4], 1

</llo_original>
